<compile_context>
chip_gen: v5e
topology: v5e:2x2
jax: 0.10.0
libtpu: 0.0.40
codegen_flags: <defaults>
</compile_context>

<pallas_src>
import numpy as np
import jax
import jax.numpy as jnp
from jax import lax
from jax.experimental import pallas as pl
from jax.experimental.pallas import tpu as pltpu


# ---------------------------------------------------------------------------
# Kernel 1: QuaternionRotaryPositionalEncoding (elementwise, memory-bound)
# ---------------------------------------------------------------------------
def qrope_kernel(x_ref, ang_ref, o_ref):
    """x_ref/o_ref: (B, TILE_S, D*4) blocks; ang_ref: (TILE_S, D*4) broadcast over batch."""
    x = x_ref[...].astype(jnp.float32)
    o_ref[...] = (x * ang_ref[...]).astype(o_ref.dtype)


def quaternion_rotary_positional_encoding(x: jnp.ndarray,
                                          base: float = 10000.0,
                                          *,
                                          tile_bytes: int = 2 * 1024 * 1024) -> jnp.ndarray:
    """Pallas QuaternionRotaryPositionalEncoding.forward(x); x: (B, S, D, 4)."""
    B, S, D, Q = x.shape
    D4 = D * Q

    # Angle table once, in f32 (matches the torch buffer math incl. the +1e-6).
    inv_freq = 1.0 / (base ** (jnp.arange(0, D, 2, dtype=jnp.float32) / D + 1e-6))
    t = jnp.arange(S, dtype=jnp.float32)
    freqs = t[:, None] * inv_freq[None, :]                           # (S, D//2)
    angles = jnp.concatenate([jnp.sin(freqs), jnp.cos(freqs)], -1)   # (S, D)

    # Fold the quaternion axis into lanes: ang4[s, 4*d + q] == angles[s, d].
    ang4 = jnp.repeat(angles, Q, axis=-1)                            # (S, D4)
    x_flat = x.reshape(B, S, D4)

    # Sequence tile: ~tile_bytes per x block, multiple of 8 sublanes (or full S).
    bytes_per_seq_row = B * D4 * x_flat.dtype.itemsize
    tile_s = max(8, (tile_bytes // max(1, bytes_per_seq_row)) // 8 * 8)
    tile_s = min(tile_s, S) if S >= 8 else S

    out_flat = pl.pallas_call(
        qrope_kernel,
        out_shape=jax.ShapeDtypeStruct((B, S, D4), x.dtype),
        grid_spec=pltpu.PrefetchScalarGridSpec(
            num_scalar_prefetch=0,
            grid=(pl.cdiv(S, tile_s),),
            in_specs=[
                pl.BlockSpec((B, tile_s, D4), lambda s: (0, s, 0)),
                pl.BlockSpec((tile_s, D4), lambda s: (s, 0)),
            ],
            out_specs=pl.BlockSpec((B, tile_s, D4), lambda s: (0, s, 0)),
        ),
        compiler_params=pltpu.CompilerParams(dimension_semantics=("parallel",)),
    )(x_flat, ang4)
    return out_flat.reshape(B, S, D, Q)


def qrope_reference(x: jnp.ndarray, base: float = 10000.0) -> jnp.ndarray:
    B, S, D, Q = x.shape
    inv_freq = 1.0 / (base ** (jnp.arange(0, D, 2, dtype=jnp.float32) / D + 1e-6))
    t = jnp.arange(S, dtype=jnp.float32)
    freqs = t[:, None] * inv_freq[None, :]
    angles = jnp.concatenate([jnp.sin(freqs), jnp.cos(freqs)], -1)[None, :, :, None]
    return x * angles


# ---------------------------------------------------------------------------
# Kernel 2: QuaternionLinear — 16 component matmuls fused into one MXU matmul
# ---------------------------------------------------------------------------
def qlinear_kernel(x_ref, w_ref, b_ref, o_ref):
    """x_ref: (tm, 4*Din); w_ref: (4*Din, tn); b_ref: (1, tn); o_ref: (tm, tn)."""
    acc = jnp.dot(x_ref[...], w_ref[...], preferred_element_type=jnp.float32)
    o_ref[...] = (acc + b_ref[...]).astype(o_ref.dtype)


def _pack_quaternion_weight(wr, wi, wj, wk):
    """Hamilton-product block matrix: input layout [r|i|j|k] -> output layout [r|i|j|k]."""
    rT, iT, jT, kT = wr.T, wi.T, wj.T, wk.T            # each (Din, Dout)
    row_r = jnp.concatenate([rT,   iT,  jT,  kT], axis=1)   # r contributes
    row_i = jnp.concatenate([-iT,  rT, -kT,  jT], axis=1)   # i contributes
    row_j = jnp.concatenate([-jT,  kT,  rT, -iT], axis=1)   # j contributes
    row_k = jnp.concatenate([-kT, -jT,  iT,  rT], axis=1)   # k contributes
    return jnp.concatenate([row_r, row_i, row_j, row_k], axis=0)  # (4*Din, 4*Dout)


def quaternion_linear(x, wr, wi, wj, wk, bias=None, *, tm_max=256, tn_max=512):
    """Pallas QuaternionLinear.forward(x); x: (B, S, Din, 4), weights: (Dout, Din)."""
    B, S, Din, Q = x.shape
    assert Q == 4
    Dout = wr.shape[0]
    M, K, N = B * S, 4 * Din, 4 * Dout

    # Component-blocked, lane-dense input: (M, 4*Din) = [r | i | j | k].
    x2 = jnp.moveaxis(x, -1, -2).reshape(M, K).astype(jnp.float32)
    w_big = _pack_quaternion_weight(wr, wi, wj, wk).astype(jnp.float32)
    if bias is None:
        b2 = jnp.zeros((1, N), jnp.float32)
    else:
        b2 = bias.T.reshape(1, N).astype(jnp.float32)    # [:, q*Dout + o] = bias[o, q]

    # Row tile: multiple of 8 sublanes; pad M so the grid divides evenly.
    tm = min(tm_max, max(8, ((M + 7) // 8) * 8))
    Mp = ((M + tm - 1) // tm) * tm
    if Mp != M:
        x2 = jnp.pad(x2, ((0, Mp - M), (0, 0)))

    # Output tile: lane-dense divisor of N (multiple of 128) or full N.
    tn = N
    if N % 128 == 0:
        for cand in (tn_max, 384, 256, 128):
            if cand <= N and N % cand == 0 and cand % 128 == 0:
                tn = cand
                break

    out2 = pl.pallas_call(
        qlinear_kernel,
        out_shape=jax.ShapeDtypeStruct((Mp, N), x.dtype),
        grid_spec=pltpu.PrefetchScalarGridSpec(
            num_scalar_prefetch=0,
            grid=(Mp // tm, N // tn),
            in_specs=[
                pl.BlockSpec((tm, K), lambda i, j: (i, 0)),
                pl.BlockSpec((K, tn), lambda i, j: (0, j)),
                pl.BlockSpec((1, tn), lambda i, j: (0, j)),
            ],
            out_specs=pl.BlockSpec((tm, tn), lambda i, j: (i, j)),
        ),
        compiler_params=pltpu.CompilerParams(
            dimension_semantics=("parallel", "parallel")),
    )(x2, w_big, b2)

    out2 = out2[:M]
    return jnp.moveaxis(out2.reshape(B, S, Q, Dout), -2, -1)   # (B, S, Dout, 4)


def qlinear_reference(x, wr, wi, wj, wk, bias=None):
    """Pure-JAX transcription of QuaternionLinear.forward, for checking."""
    lin = lambda a, w: jnp.matmul(a, w.T)
    r, i, j, k = x[..., 0], x[..., 1], x[..., 2], x[..., 3]
    r_out = lin(r, wr) - lin(i, wi) - lin(j, wj) - lin(k, wk)
    i_out = lin(r, wi) + lin(i, wr) + lin(j, wk) - lin(k, wj)
    j_out = lin(r, wj) - lin(i, wk) + lin(j, wr) + lin(k, wi)
    k_out = lin(r, wk) + lin(i, wj) - lin(j, wi) + lin(k, wr)
    out = jnp.stack([r_out, i_out, j_out, k_out], axis=-1)
    if bias is not None:
        out = out + bias[None, None]
    return out


def _snap_bf16(a):
    """Round to bf16-representable f32 so MXU bf16 passes are exact (tight numeric check)."""
    return a.astype(jnp.bfloat16).astype(jnp.float32)


if __name__ == "__main__":
    key = jax.random.PRNGKey(0)
    B, S, D, Q = 2, 8, 32, 4        # batch, seq, embed_dim, quaternion components
    Dh = 32                         # out_features for the QuaternionLinear demo
    k1, k2, k3, k4, k5, k6 = jax.random.split(key, 6)

    x = jax.random.normal(k1, (B, S, D, Q), dtype=jnp.float32)

    # --- pos_encoder stage ---------------------------------------------------
    rope_out = jax.block_until_ready(quaternion_rotary_positional_encoding(x))
    rope_ref = qrope_reference(x)
    assert rope_out.shape == rope_ref.shape and rope_out.dtype == rope_ref.dtype
    np.testing.assert_allclose(np.asarray(rope_out), np.asarray(rope_ref),
                               rtol=1e-5, atol=1e-5)

    # --- QuaternionLinear stage (q/k/v/out projections & FFN layers) ---------
    wr = _snap_bf16(jax.random.normal(k2, (Dh, D), jnp.float32)) * 0.125
    wi = _snap_bf16(jax.random.normal(k3, (Dh, D), jnp.float32)) * 0.125
    wj = _snap_bf16(jax.random.normal(k4, (Dh, D), jnp.float32)) * 0.125
    wk = _snap_bf16(jax.random.normal(k5, (Dh, D), jnp.float32)) * 0.125
    bias = jax.random.normal(k6, (Dh, 4), jnp.float32) * 0.1
    x_lin = _snap_bf16(rope_out)    # feed the (bf16-snapped) rope output through the projection

    lin_out = jax.block_until_ready(quaternion_linear(x_lin, wr, wi, wj, wk, bias))
    lin_ref = qlinear_reference(x_lin, wr, wi, wj, wk, bias)
    assert lin_out.shape == lin_ref.shape and lin_out.dtype == lin_ref.dtype
    np.testing.assert_allclose(np.asarray(lin_out), np.asarray(lin_ref),
                               rtol=1e-5, atol=1e-5)

    print("KERNEL_OK")
</pallas_src>

<mosaic_0001>
module attributes {stable_mosaic.version = 11 : i64} {
  func.func @qrope_kernel(%arg0: i32, %arg1: memref<2x8x128xf32, #tpu.memory_space<vmem>>, %arg2: memref<8x128xf32, #tpu.memory_space<vmem>>, %arg3: memref<2x8x128xf32, #tpu.memory_space<vmem>>) attributes {dimension_semantics = [#tpu.dimension_semantics<parallel>], iteration_bounds = array<i64: 1>, scalar_prefetch = 0 : i64, scratch_operands = 0 : i64, tpu.core_type = #tpu.core_type<tc>, window_params = [{transform_indices = @transform_0, window_bounds = array<i64: 2, 8, 128>}, {transform_indices = @transform_1, window_bounds = array<i64: 8, 128>}, {transform_indices = @transform_2, window_bounds = array<i64: 2, 8, 128>}]} {
    %c0 = arith.constant 0 : index
    %c0_0 = arith.constant 0 : index
    %c0_1 = arith.constant 0 : index
    %0 = vector.load %arg1[%c0, %c0_0, %c0_1] : memref<2x8x128xf32, #tpu.memory_space<vmem>>, vector<2x8x128xf32>
    %c0_2 = arith.constant 0 : index
    %c0_3 = arith.constant 0 : index
    %1 = vector.load %arg2[%c0_2, %c0_3] : memref<8x128xf32, #tpu.memory_space<vmem>>, vector<8x128xf32>
    %2 = vector.shape_cast %1 : vector<8x128xf32> to vector<1x8x128xf32>
    %3 = vector.broadcast %2 : vector<1x8x128xf32> to vector<2x8x128xf32>
    %4 = arith.mulf %0, %3 : vector<2x8x128xf32>
    %c0_4 = arith.constant 0 : index
    %c0_5 = arith.constant 0 : index
    %c0_6 = arith.constant 0 : index
    %5 = vector.load %arg3[%c0_4, %c0_5, %c0_6] : memref<2x8x128xf32, #tpu.memory_space<vmem>>, vector<2x8x128xf32>
    tpu.vector_store %arg3[%c0_4, %c0_5, %c0_6], %4 {strides = array<i32>} : memref<2x8x128xf32, #tpu.memory_space<vmem>>, vector<2x8x128xf32>,
    return
  }
  func.func @transform_0(%arg0: i32) -> (i32, i32, i32) {
    %c0_i32 = arith.constant 0 : i32
    %c0_i32_0 = arith.constant 0 : i32
    %c0_i32_1 = arith.constant 0 : i32
    return %c0_i32, %arg0, %c0_i32_0 : i32, i32, i32
  }
  func.func @transform_1(%arg0: i32) -> (i32, i32) {
    %c0_i32 = arith.constant 0 : i32
    %c0_i32_0 = arith.constant 0 : i32
    return %arg0, %c0_i32 : i32, i32
  }
  func.func @transform_2(%arg0: i32) -> (i32, i32, i32) {
    %c0_i32 = arith.constant 0 : i32
    %c0_i32_0 = arith.constant 0 : i32
    %c0_i32_1 = arith.constant 0 : i32
    return %c0_i32, %arg0, %c0_i32_0 : i32, i32, i32
  }
}

</mosaic_0001>

<llo_original>
// kernel: tpu_custom_call.1
$region0: #{tpu_custom_call.1}
  #allocation0 [shape = 'u32[]', space=smem, size = 0x4, offset = 0x4, fixed_abs, tag = 'smem constant byte address 0x4 - core index']
  #allocation1 [shape = 'u32[72,128]{1,0:T(1,128)}', space=vmem, size = 0x9000, scoped, tag = 'internal scratch']
  %s0 = inlined_call_operand.hbm [shape: f32[2,8,128], index: 0, kind: input, shape index: {}]
  %s1 = inlined_call_operand.hbm [shape: f32[8,128], index: 1, kind: input, shape index: {}]
  %s2 = inlined_call_operand.hbm [shape: f32[2,8,128], index: 2, kind: output, shape index: {}]
  %s3 = sld [smem:[#allocation0]]
  $region26: #{tpu_custom_call.1} parent=0
    _
  %s5 = ssub.s32 1, %s3
  %s6 = scalar_select 0, %s5, %s3
  $region1: #{tpu_custom_call.1} parent=0
    #allocation2 [shape = 'u8[8192]{0}', space=vmem, size = 0x2000, scoped, tag = 'input window, operand 0, single buffered']
    #allocation3 [shape = 's32[1]{0}', space=sflag, size = 0x4, scoped, tag = 'scoped memory for tpu_custom_call.1']
    #allocation4 [shape = 's32[1]{0}', space=sflag, size = 0x4, scoped, tag = 'scoped memory for tpu_custom_call.1']
    #allocation5 [shape = 'u8[4096]{0}', space=vmem, size = 0x1000, scoped, tag = 'input window, operand 1, single buffered']
    #allocation6 [shape = 's32[1]{0}', space=sflag, size = 0x4, scoped, tag = 'scoped memory for tpu_custom_call.1']
    #allocation7 [shape = 'u8[8192]{0}', space=vmem, size = 0x2000, scoped, tag = 'output window, operand 0, single buffered']
    %7 = vsyncpa [#allocation3], 0
    %8 = vsyncpa [#allocation6], 0
    %9 = vsyncpa [#allocation4], 0
    // Predicated region
    $region2: #{tpu_custom_call.1} parent=1 // pred_check
      _
    $region3: #{tpu_custom_call.1} parent=1 // pred_check_branch
      %11 = sbr.rel (0) target = $region5
    $region4: #{tpu_custom_call.1} parent=1 // pred_region
      %13 = vsyncadd [#allocation3], 0
      %s14 = sshll.u32 %s0, 4
      %s15 = int_to_ptr.hbm [resolvable:$true] %s14
      %s16 = sshll.u32 [#allocation2], 4
      %s17 = int_to_ptr.vmem [resolvable:$true] %s16
      %22 = dma.hbm_to_vmem [thread:$0]  %s15, 256, %s17, [#allocation3], 128, 128, 8
    $region5: #{tpu_custom_call.1} parent=1 // pred_fallthru
      _
    // Predicated region
    $region6: #{tpu_custom_call.1} parent=1 // pred_check
      _
    $region7: #{tpu_custom_call.1} parent=1 // pred_check_branch
      %24 = sbr.rel (0) target = $region9
    $region8: #{tpu_custom_call.1} parent=1 // pred_region
      %26 = vsyncadd [#allocation6], 0
      %s28 = sshll.u32 %s1, 4
      %s29 = int_to_ptr.hbm [resolvable:$true] %s28
      %s30 = sshll.u32 [#allocation5], 4
      %s31 = int_to_ptr.vmem [resolvable:$true] %s30
      %33 = dma.hbm_to_vmem [thread:$0]  %s29, 128, %s31, [#allocation6]
    $region9: #{tpu_custom_call.1} parent=1 // pred_fallthru
      _
    // Predicated region
    $region10: #{tpu_custom_call.1} parent=1 // pred_check
      _
    $region11: #{tpu_custom_call.1} parent=1 // pred_check_branch
      %35 = sbr.rel (0) target = $region13
    $region12: #{tpu_custom_call.1} parent=1 // pred_region
      %37 = dma.done [#allocation3], 256
    $region13: #{tpu_custom_call.1} parent=1 // pred_fallthru
      _
    // Predicated region
    $region14: #{tpu_custom_call.1} parent=1 // pred_check
      _
    $region15: #{tpu_custom_call.1} parent=1 // pred_check_branch
      %39 = sbr.rel (0) target = $region17
    $region16: #{tpu_custom_call.1} parent=1 // pred_region
      %41 = dma.done [#allocation6], 128
    $region17: #{tpu_custom_call.1} parent=1 // pred_fallthru
      _
    %v42 = vld [vmem:[#allocation2] sm:$0xff]
    %v43 = vld [vmem:[#allocation2 + $0x8] sm:$0xff]
    %v44 = vld [vmem:[#allocation5] sm:$0xff]
    %v45 = vmul.f32 %v42, %v44
    %v46 = vmul.f32 %v43, %v44
    %47 = vst [vmem:[#allocation7] sm:$0xff] %v45
    %48 = vst [vmem:[#allocation7 + $0x8] sm:$0xff] %v46
    // Predicated region
    $region18: #{tpu_custom_call.1} parent=1 // pred_check
      _
    $region19: #{tpu_custom_call.1} parent=1 // pred_check_branch
      %50 = sbr.rel (0) target = $region21
    $region20: #{tpu_custom_call.1} parent=1 // pred_region
      %52 = vsyncadd [#allocation4], 0
      %s53 = sshll.u32 [#allocation7], 4
      %s54 = int_to_ptr.vmem [resolvable:$true] %s53
      %s55 = sshll.u32 %s2, 4
      %s56 = int_to_ptr.hbm [resolvable:$true] %s55
      %61 = dma.vmem_to_hbm [thread:$0]  %s54, 256, %s56, [#allocation4], 128, 128, 8
    $region21: #{tpu_custom_call.1} parent=1 // pred_fallthru
      _
    // Predicated region
    $region22: #{tpu_custom_call.1} parent=1 // pred_check
      _
    $region23: #{tpu_custom_call.1} parent=1 // pred_check_branch
      %63 = sbr.rel (0) target = $region25
    $region24: #{tpu_custom_call.1} parent=1 // pred_region
      %65 = dma.done [#allocation4], 256
    $region25: #{tpu_custom_call.1} parent=1 // pred_fallthru
      _
    %66 = vsyncpa [#allocation3], 1
    %67 = vsyncpa [#allocation6], 1
    %68 = vsyncpa [#allocation4], 1

</llo_original>
